<compile_context>
chip_gen: v5e
topology: v5e:2x2
jax: 0.10.0
libtpu: 0.0.40
codegen_flags: <defaults>
</compile_context>

<pallas_src>
import jax
import jax.numpy as jnp
import numpy as np
from jax.experimental import pallas as pl
from jax.experimental.pallas import tpu as pltpu


def _treeify_matmul_kernel(pos_ref, w_ref, out_ref):
    # pos_ref: (TM, WD), w_ref: (WD, NF) block-diagonal, out_ref: (TM, NF).
    out_ref[...] = jnp.dot(
        pos_ref[...],
        w_ref[...],
        precision=jax.lax.Precision.HIGHEST,
        preferred_element_type=jnp.float32,
    )


def build_tree_weights(p, depth, width, d_model):
    """Mirror of TreePositionalEncodings.build_weights (tiny param-only glue)."""
    tree_params = jnp.tanh(p)                                              # (T,)
    tree_norm = jnp.sqrt((1.0 - jnp.square(tree_params)) * d_model / 2.0)  # (T,)
    depths = jnp.arange(depth, dtype=jnp.float32)                          # (depth,)
    # w[d, c, t] = tanh(p[t]) ** d * norm[t]   (constant over the width axis c)
    w = (tree_params[None, None, :] ** depths[:, None, None]) * tree_norm
    w = jnp.broadcast_to(w, (depth, width, p.shape[0]))
    return w.reshape(depth * width, p.shape[0])                            # (WD, T)


def _round_up(x, k):
    return ((x + k - 1) // k) * k


def tree_positional_encodings(positions, p, *, depth, width, d_model,
                              max_tile_rows=2048):
    """positions: [bs, n, width*depth] -> [bs, n, width*depth*d_tree_param]."""
    bs, n, wd = positions.shape
    assert wd == width * depth
    t = p.shape[0]
    n_feat = wd * t

    tree_weights = build_tree_weights(p, depth, width, d_model)            # (WD, T)

    # Block-diagonal expansion: w_bd[i, j*T + t] = (i == j) * tree_weights[j, t]
    # so that (pos @ w_bd)[m, j*T + t] = pos[m, j] * tree_weights[j, t].
    eye = jnp.eye(wd, dtype=jnp.float32)
    w_bd = (eye[:, :, None] * tree_weights[None, :, :]).reshape(wd, n_feat)

    m = bs * n
    pos2 = positions.reshape(m, wd).astype(jnp.float32)

    # Sublane-aligned row tiles with a padded tail (no untiled giant-block fallback).
    tm = min(max_tile_rows, _round_up(m, 8))
    m_pad = _round_up(m, tm)
    if m_pad != m:
        pos2 = jnp.pad(pos2, ((0, m_pad - m), (0, 0)))

    grid = (m_pad // tm,)

    out = pl.pallas_call(
        _treeify_matmul_kernel,
        out_shape=jax.ShapeDtypeStruct((m_pad, n_feat), jnp.float32),
        grid=grid,
        in_specs=[
            pl.BlockSpec((tm, wd), lambda i: (i, 0)),
            # Tiny weight block; constant index_map keeps it resident in VMEM.
            pl.BlockSpec((wd, n_feat), lambda i: (0, 0)),
        ],
        out_specs=pl.BlockSpec((tm, n_feat), lambda i: (i, 0)),
        compiler_params=pltpu.CompilerParams(
            dimension_semantics=("parallel",),
        ),
    )(pos2, w_bd)

    if m_pad != m:
        out = out[:m]
    return out.reshape(bs, n, n_feat)


if __name__ == "__main__":
    # Small but structurally consistent config:
    #   depth=4, degree(width)=8, n_feat=128, d_model=128
    #   -> d_tree_param = n_feat // (depth*width) = 4
    depth, width, n_feat, d_model = 4, 8, 128, 128
    d_tree_param = n_feat // (depth * width)
    bs, n = 2, 8

    key = jax.random.PRNGKey(0)
    kp, kx = jax.random.split(key)

    # Parameter p ~ U(0.7, 0.999), as in init_weights() (deterministic here).
    p = jax.random.uniform(kp, (d_tree_param,), dtype=jnp.float32,
                           minval=0.7, maxval=0.999)
    # Tree positions input [bs, n, width*depth].
    positions = jax.random.uniform(kx, (bs, n, width * depth), dtype=jnp.float32)

    out = tree_positional_encodings(positions, p, depth=depth, width=width,
                                    d_model=d_model)
    out = jax.block_until_ready(out)

    # Pure-JAX reference (same semantics as the PyTorch forward).
    tw = build_tree_weights(p, depth, width, d_model)                      # (WD, T)
    ref = (positions[..., None] * tw[None, None, :, :]).reshape(bs, n, n_feat)

    assert out.shape == (bs, n, n_feat), out.shape
    # MXU f32 (HIGHEST precision) matmul is accurate to ~1e-7 relative.
    np.testing.assert_allclose(np.asarray(out), np.asarray(ref),
                               rtol=1e-5, atol=1e-6)

    print("KERNEL_OK")
</pallas_src>

<mosaic_0001>
module attributes {stable_mosaic.version = 11 : i64} {
  func.func @_treeify_matmul_kernel(%arg0: i32, %arg1: memref<16x32xf32, #tpu.memory_space<vmem>>, %arg2: memref<32x128xf32, #tpu.memory_space<vmem>>, %arg3: memref<16x128xf32, #tpu.memory_space<vmem>>) attributes {dimension_semantics = [#tpu.dimension_semantics<parallel>], iteration_bounds = array<i64: 1>, scalar_prefetch = 0 : i64, scratch_operands = 0 : i64, tpu.core_type = #tpu.core_type<tc>, window_params = [{transform_indices = @transform_0, window_bounds = array<i64: 16, 32>}, {pipeline_mode = #tpu.pipeline_mode<synchronous>, transform_indices = @transform_1, window_bounds = array<i64: 32, 128>}, {transform_indices = @transform_2, window_bounds = array<i64: 16, 128>}]} {
    %c0 = arith.constant 0 : index
    %c0_0 = arith.constant 0 : index
    %0 = vector.load %arg1[%c0, %c0_0] : memref<16x32xf32, #tpu.memory_space<vmem>>, vector<16x32xf32>
    %c0_1 = arith.constant 0 : index
    %c0_2 = arith.constant 0 : index
    %1 = vector.load %arg2[%c0_1, %c0_2] : memref<32x128xf32, #tpu.memory_space<vmem>>, vector<32x128xf32>
    %cst = arith.constant dense<0.000000e+00> : vector<16x128xf32>
    %2 = tpu.matmul %0, %1, %cst {dimension_numbers = #tpu.dot_dimension_numbers<[1], [0], [0], [1], [0, 0, 1, 1], [], []>, precision = #tpu.contract_precision<fp32>} : vector<16x32xf32>, vector<32x128xf32>, vector<16x128xf32> -> vector<16x128xf32>
    %c0_3 = arith.constant 0 : index
    %c0_4 = arith.constant 0 : index
    %3 = vector.load %arg3[%c0_3, %c0_4] : memref<16x128xf32, #tpu.memory_space<vmem>>, vector<16x128xf32>
    tpu.vector_store %arg3[%c0_3, %c0_4], %2 {strides = array<i32>} : memref<16x128xf32, #tpu.memory_space<vmem>>, vector<16x128xf32>,
    return
  }
  func.func @transform_0(%arg0: i32) -> (i32, i32) {
    %c0_i32 = arith.constant 0 : i32
    %c0_i32_0 = arith.constant 0 : i32
    return %arg0, %c0_i32 : i32, i32
  }
  func.func @transform_1(%arg0: i32) -> (i32, i32) {
    %c0_i32 = arith.constant 0 : i32
    %c0_i32_0 = arith.constant 0 : i32
    %c0_i32_1 = arith.constant 0 : i32
    return %c0_i32, %c0_i32_0 : i32, i32
  }
  func.func @transform_2(%arg0: i32) -> (i32, i32) {
    %c0_i32 = arith.constant 0 : i32
    %c0_i32_0 = arith.constant 0 : i32
    return %arg0, %c0_i32 : i32, i32
  }
}

</mosaic_0001>

<llo_original>
// kernel: tpu_custom_call.1
$region0: #{tpu_custom_call.1}
  #allocation0 [shape = 'u32[]', space=smem, size = 0x4, offset = 0x4, fixed_abs, tag = 'smem constant byte address 0x4 - core index']
  #allocation1 [shape = 'u32[72,128]{1,0:T(1,128)}', space=vmem, size = 0x9000, scoped, tag = 'internal scratch']
  %s0 = inlined_call_operand.hbm [shape: f32[16,32], index: 0, kind: input, shape index: {}]
  %s1 = inlined_call_operand.hbm [shape: f32[32,128], index: 1, kind: input, shape index: {}]
  %s2 = inlined_call_operand.hbm [shape: f32[16,128], index: 2, kind: output, shape index: {}]
  %s3 = sld [smem:[#allocation0]]
  $region26: #{tpu_custom_call.1} parent=0
    _
  %s5 = ssub.s32 1, %s3
  %s6 = scalar_select 0, %s5, %s3
  $region1: #{tpu_custom_call.1} parent=0
    #allocation2 [shape = 'u8[8192]{0}', space=vmem, size = 0x2000, scoped, tag = 'input window, operand 0, single buffered']
    #allocation3 [shape = 's32[1]{0}', space=sflag, size = 0x4, scoped, tag = 'scoped memory for tpu_custom_call.1']
    #allocation4 [shape = 's32[1]{0}', space=sflag, size = 0x4, scoped, tag = 'scoped memory for tpu_custom_call.1']
    #allocation5 [shape = 'u8[16384]{0}', space=vmem, size = 0x4000, scoped, tag = 'input window, operand 1, single buffered']
    #allocation6 [shape = 's32[1]{0}', space=sflag, size = 0x4, scoped, tag = 'scoped memory for tpu_custom_call.1']
    #allocation7 [shape = 'u8[8192]{0}', space=vmem, size = 0x2000, scoped, tag = 'output window, operand 0, single buffered']
    %7 = vsyncpa [#allocation3], 0
    %8 = vsyncpa [#allocation6], 0
    %9 = vsyncpa [#allocation4], 0
    // Predicated region
    $region2: #{tpu_custom_call.1} parent=1 // pred_check
      _
    $region3: #{tpu_custom_call.1} parent=1 // pred_check_branch
      %11 = sbr.rel (0) target = $region5
    $region4: #{tpu_custom_call.1} parent=1 // pred_region
      %13 = vsyncadd [#allocation3], 0
      %s14 = sshll.u32 %s0, 4
      %s15 = int_to_ptr.hbm [resolvable:$true] %s14
      %s16 = sshll.u32 [#allocation2], 4
      %s17 = int_to_ptr.vmem [resolvable:$true] %s16
      %22 = dma.hbm_to_vmem [thread:$0]  %s15, 256, %s17, [#allocation3], 128, 128, 8
    $region5: #{tpu_custom_call.1} parent=1 // pred_fallthru
      _
    // Predicated region
    $region6: #{tpu_custom_call.1} parent=1 // pred_check
      _
    $region7: #{tpu_custom_call.1} parent=1 // pred_check_branch
      %24 = sbr.rel (0) target = $region9
    $region8: #{tpu_custom_call.1} parent=1 // pred_region
      %26 = vsyncadd [#allocation6], 0
      %s27 = sshll.u32 %s1, 4
      %s28 = int_to_ptr.hbm [resolvable:$true] %s27
      %s29 = sshll.u32 [#allocation5], 4
      %s30 = int_to_ptr.vmem [resolvable:$true] %s29
      %35 = dma.hbm_to_vmem [thread:$0]  %s28, 512, %s30, [#allocation6], 128, 128, 8
    $region9: #{tpu_custom_call.1} parent=1 // pred_fallthru
      _
    // Predicated region
    $region10: #{tpu_custom_call.1} parent=1 // pred_check
      _
    $region11: #{tpu_custom_call.1} parent=1 // pred_check_branch
      %37 = sbr.rel (0) target = $region13
    $region12: #{tpu_custom_call.1} parent=1 // pred_region
      %39 = dma.done [#allocation3], 256
    $region13: #{tpu_custom_call.1} parent=1 // pred_fallthru
      _
    // Predicated region
    $region14: #{tpu_custom_call.1} parent=1 // pred_check
      _
    $region15: #{tpu_custom_call.1} parent=1 // pred_check_branch
      %41 = sbr.rel (0) target = $region17
    $region16: #{tpu_custom_call.1} parent=1 // pred_region
      %43 = dma.done [#allocation6], 512
    $region17: #{tpu_custom_call.1} parent=1 // pred_fallthru
      _
    %v44 = vld [vmem:[#allocation2] sm:$0xff]
    %v45 = vld [vmem:[#allocation2 + $0x8] sm:$0xff]
    %v46 = vld [vmem:[#allocation5] sm:$0xff]
    %v47 = vld [vmem:[#allocation5 + $0x8] sm:$0xff]
    %v48 = vld [vmem:[#allocation5 + $0x10] sm:$0xff]
    %v49 = vld [vmem:[#allocation5 + $0x18] sm:$0xff]
    %vm50 = vcmask 261120
    %v52 = vsel %vm50, %v44, 0
    %v55 = vsel %vm50, %v45, 0
    %57 = vmatpush.msra.mxu0 0.0
    %58 = vmatpush.msra.mxu0 0.0
    %59 = vmatpush.msra.mxu0 0.0
    %60 = vmatpush.msra.mxu0 0.0
    %61 = vmatpush.msra.mxu0 0.0
    %62 = vmatpush.msra.mxu0 0.0
    %63 = vmatpush.msra.mxu0 0.0
    %64 = vmatpush.msra.mxu0 0.0
    %65 = vmatpush.msra.mxu0 0.0
    %66 = vmatpush.msra.mxu0 0.0
    %67 = vmatpush.msra.mxu0 0.0
    %68 = vmatpush.msra.mxu0 0.0
    %v69 = vand.u32 %v49, 4294901760
    %70 = vmatpush.msra.mxu0 %v69
    %v71 = vand.u32 %v48, 4294901760
    %72 = vmatpush.msra.mxu0 %v71
    %v73 = vand.u32 %v47, 4294901760
    %74 = vmatpush.msra.mxu0 %v73
    %v75 = vand.u32 %v46, 4294901760
    %76 = vmatpush.msra.mxu0 %v75
    %v77 = vand.u32 %v52, 4294901760
    %v78 = vsub.f32 %v52, %v77
    %v79 = vand.u32 %v78, 4294901760
    %v80 = vsub.f32 %v78, %v79
    %v81 = vand.u32 %v80, 4294901760
    %82 = vmatmul.f32.gmra.mxu0 %v81
    %v83 = vpop.f32.mrf.mxu0
    %v84 = vadd.f32 0.0, %v83
    %v85 = vand.u32 %v55, 4294901760
    %v86 = vsub.f32 %v55, %v85
    %v87 = vand.u32 %v86, 4294901760
    %v88 = vsub.f32 %v86, %v87
    %v89 = vand.u32 %v88, 4294901760
    %90 = vmatmul.f32.gmra.mxu0 %v89
    %v91 = vpop.f32.mrf.mxu0
    %v92 = vadd.f32 0.0, %v91
    %93 = vdwg.mxu0
    %94 = vmatpush.msra.mxu0 0.0
    %95 = vmatpush.msra.mxu0 0.0
    %96 = vmatpush.msra.mxu0 0.0
    %97 = vmatpush.msra.mxu0 0.0
    %98 = vmatpush.msra.mxu0 0.0
    %99 = vmatpush.msra.mxu0 0.0
    %100 = vmatpush.msra.mxu0 0.0
    %101 = vmatpush.msra.mxu0 0.0
    %102 = vmatpush.msra.mxu0 0.0
    %103 = vmatpush.msra.mxu0 0.0
    %104 = vmatpush.msra.mxu0 0.0
    %105 = vmatpush.msra.mxu0 0.0
    %v106 = vand.u32 %v49, 4294901760
    %v107 = vsub.f32 %v49, %v106
    %v108 = vand.u32 %v107, 4294901760
    %v109 = vsub.f32 %v107, %v108
    %v110 = vand.u32 %v109, 4294901760
    %111 = vmatpush.msra.mxu0 %v110
    %v112 = vand.u32 %v48, 4294901760
    %v113 = vsub.f32 %v48, %v112
    %v114 = vand.u32 %v113, 4294901760
    %v115 = vsub.f32 %v113, %v114
    %v116 = vand.u32 %v115, 4294901760
    %117 = vmatpush.msra.mxu0 %v116
    %v118 = vand.u32 %v47, 4294901760
    %v119 = vsub.f32 %v47, %v118
    %v120 = vand.u32 %v119, 4294901760
    %v121 = vsub.f32 %v119, %v120
    %v122 = vand.u32 %v121, 4294901760
    %123 = vmatpush.msra.mxu0 %v122
    %v124 = vand.u32 %v46, 4294901760
    %v125 = vsub.f32 %v46, %v124
    %v126 = vand.u32 %v125, 4294901760
    %v127 = vsub.f32 %v125, %v126
    %v128 = vand.u32 %v127, 4294901760
    %129 = vmatpush.msra.mxu0 %v128
    %v130 = vand.u32 %v52, 4294901760
    %131 = vmatmul.f32.gmra.mxu0 %v130
    %v132 = vpop.f32.mrf.mxu0
    %v133 = vadd.f32 %v84, %v132
    %v134 = vand.u32 %v55, 4294901760
    %135 = vmatmul.f32.gmra.mxu0 %v134
    %v136 = vpop.f32.mrf.mxu0
    %v137 = vadd.f32 %v92, %v136
    %138 = vdwg.mxu0
    %139 = vmatpush.msra.mxu0 0.0
    %140 = vmatpush.msra.mxu0 0.0
    %141 = vmatpush.msra.mxu0 0.0
    %142 = vmatpush.msra.mxu0 0.0
    %143 = vmatpush.msra.mxu0 0.0
    %144 = vmatpush.msra.mxu0 0.0
    %145 = vmatpush.msra.mxu0 0.0
    %146 = vmatpush.msra.mxu0 0.0
    %147 = vmatpush.msra.mxu0 0.0
    %148 = vmatpush.msra.mxu0 0.0
    %149 = vmatpush.msra.mxu0 0.0
    %150 = vmatpush.msra.mxu0 0.0
    %v151 = vand.u32 %v49, 4294901760
    %v152 = vsub.f32 %v49, %v151
    %153 = vmatpush.msra.mxu0 %v152
    %v154 = vand.u32 %v48, 4294901760
    %v155 = vsub.f32 %v48, %v154
    %156 = vmatpush.msra.mxu0 %v155
    %v157 = vand.u32 %v47, 4294901760
    %v158 = vsub.f32 %v47, %v157
    %159 = vmatpush.msra.mxu0 %v158
    %v160 = vand.u32 %v46, 4294901760
    %v161 = vsub.f32 %v46, %v160
    %162 = vmatpush.msra.mxu0 %v161
    %v163 = vand.u32 %v52, 4294901760
    %v164 = vsub.f32 %v52, %v163
    %165 = vmatmul.f32.gmra.mxu0 %v164
    %v166 = vpop.f32.mrf.mxu0
    %v167 = vadd.f32 %v133, %v166
    %v168 = vand.u32 %v55, 4294901760
    %v169 = vsub.f32 %v55, %v168
    %170 = vmatmul.f32.gmra.mxu0 %v169
    %v171 = vpop.f32.mrf.mxu0
    %v172 = vadd.f32 %v137, %v171
    %173 = vdwg.mxu0
    %174 = vmatpush.msra.mxu0 0.0
    %175 = vmatpush.msra.mxu0 0.0
    %176 = vmatpush.msra.mxu0 0.0
    %177 = vmatpush.msra.mxu0 0.0
    %178 = vmatpush.msra.mxu0 0.0
    %179 = vmatpush.msra.mxu0 0.0
    %180 = vmatpush.msra.mxu0 0.0
    %181 = vmatpush.msra.mxu0 0.0
    %182 = vmatpush.msra.mxu0 0.0
    %183 = vmatpush.msra.mxu0 0.0
    %184 = vmatpush.msra.mxu0 0.0
    %185 = vmatpush.msra.mxu0 0.0
    %v186 = vand.u32 %v49, 4294901760
    %187 = vmatpush.msra.mxu0 %v186
    %v188 = vand.u32 %v48, 4294901760
    %189 = vmatpush.msra.mxu0 %v188
    %v190 = vand.u32 %v47, 4294901760
    %191 = vmatpush.msra.mxu0 %v190
    %v192 = vand.u32 %v46, 4294901760
    %193 = vmatpush.msra.mxu0 %v192
    %v194 = vand.u32 %v52, 4294901760
    %v195 = vsub.f32 %v52, %v194
    %v196 = vand.u32 %v195, 4294901760
    %197 = vmatmul.f32.gmra.mxu0 %v196
    %v198 = vpop.f32.mrf.mxu0
    %v199 = vadd.f32 %v167, %v198
    %v200 = vand.u32 %v55, 4294901760
    %v201 = vsub.f32 %v55, %v200
    %v202 = vand.u32 %v201, 4294901760
    %203 = vmatmul.f32.gmra.mxu0 %v202
    %v204 = vpop.f32.mrf.mxu0
    %v205 = vadd.f32 %v172, %v204
    %206 = vdwg.mxu0
    %207 = vmatpush.msra.mxu0 0.0
    %208 = vmatpush.msra.mxu0 0.0
    %209 = vmatpush.msra.mxu0 0.0
    %210 = vmatpush.msra.mxu0 0.0
    %211 = vmatpush.msra.mxu0 0.0
    %212 = vmatpush.msra.mxu0 0.0
    %213 = vmatpush.msra.mxu0 0.0
    %214 = vmatpush.msra.mxu0 0.0
    %215 = vmatpush.msra.mxu0 0.0
    %216 = vmatpush.msra.mxu0 0.0
    %217 = vmatpush.msra.mxu0 0.0
    %218 = vmatpush.msra.mxu0 0.0
    %v219 = vand.u32 %v49, 4294901760
    %v220 = vsub.f32 %v49, %v219
    %v221 = vand.u32 %v220, 4294901760
    %222 = vmatpush.msra.mxu0 %v221
    %v223 = vand.u32 %v48, 4294901760
    %v224 = vsub.f32 %v48, %v223
    %v225 = vand.u32 %v224, 4294901760
    %226 = vmatpush.msra.mxu0 %v225
    %v227 = vand.u32 %v47, 4294901760
    %v228 = vsub.f32 %v47, %v227
    %v229 = vand.u32 %v228, 4294901760
    %230 = vmatpush.msra.mxu0 %v229
    %v231 = vand.u32 %v46, 4294901760
    %v232 = vsub.f32 %v46, %v231
    %v233 = vand.u32 %v232, 4294901760
    %234 = vmatpush.msra.mxu0 %v233
    %v235 = vand.u32 %v52, 4294901760
    %236 = vmatmul.f32.gmra.mxu0 %v235
    %v237 = vpop.f32.mrf.mxu0
    %v238 = vadd.f32 %v199, %v237
    %v239 = vand.u32 %v55, 4294901760
    %240 = vmatmul.f32.gmra.mxu0 %v239
    %v241 = vpop.f32.mrf.mxu0
    %v242 = vadd.f32 %v205, %v241
    %243 = vdwg.mxu0
    %244 = vmatpush.msra.mxu0 0.0
    %245 = vmatpush.msra.mxu0 0.0
    %246 = vmatpush.msra.mxu0 0.0
    %247 = vmatpush.msra.mxu0 0.0
    %248 = vmatpush.msra.mxu0 0.0
    %249 = vmatpush.msra.mxu0 0.0
    %250 = vmatpush.msra.mxu0 0.0
    %251 = vmatpush.msra.mxu0 0.0
    %252 = vmatpush.msra.mxu0 0.0
    %253 = vmatpush.msra.mxu0 0.0
    %254 = vmatpush.msra.mxu0 0.0
    %255 = vmatpush.msra.mxu0 0.0
    %v256 = vand.u32 %v49, 4294901760
    %257 = vmatpush.msra.mxu0 %v256
    %v258 = vand.u32 %v48, 4294901760
    %259 = vmatpush.msra.mxu0 %v258
    %v260 = vand.u32 %v47, 4294901760
    %261 = vmatpush.msra.mxu0 %v260
    %v262 = vand.u32 %v46, 4294901760
    %263 = vmatpush.msra.mxu0 %v262
    %v264 = vand.u32 %v52, 4294901760
    %265 = vmatmul.f32.gmra.mxu0 %v264
    %v266 = vpop.f32.mrf.mxu0
    %v267 = vadd.f32 %v238, %v266
    %v268 = vand.u32 %v55, 4294901760
    %269 = vmatmul.f32.gmra.mxu0 %v268
    %v270 = vpop.f32.mrf.mxu0
    %v271 = vadd.f32 %v242, %v270
    %272 = vdwg.mxu0
    %273 = vst [vmem:[#allocation7] sm:$0xff] %v267
    %274 = vst [vmem:[#allocation7 + $0x8] sm:$0xff] %v271
    // Predicated region
    $region18: #{tpu_custom_call.1} parent=1 // pred_check
      _
    $region19: #{tpu_custom_call.1} parent=1 // pred_check_branch
      %276 = sbr.rel (0) target = $region21
    $region20: #{tpu_custom_call.1} parent=1 // pred_region
      %278 = vsyncadd [#allocation4], 0
      %s279 = sshll.u32 [#allocation7], 4
      %s280 = int_to_ptr.vmem [resolvable:$true] %s279
      %s281 = sshll.u32 %s2, 4
      %s282 = int_to_ptr.hbm [resolvable:$true] %s281
      %287 = dma.vmem_to_hbm [thread:$0]  %s280, 256, %s282, [#allocation4], 128, 128, 8
    $region21: #{tpu_custom_call.1} parent=1 // pred_fallthru
      _
    // Predicated region
    $region22: #{tpu_custom_call.1} parent=1 // pred_check
      _
    $region23: #{tpu_custom_call.1} parent=1 // pred_check_branch
      %289 = sbr.rel (0) target = $region25
    $region24: #{tpu_custom_call.1} parent=1 // pred_region
      %291 = dma.done [#allocation4], 256
    $region25: #{tpu_custom_call.1} parent=1 // pred_fallthru
      _
    %292 = vsyncpa [#allocation3], 1
    %293 = vsyncpa [#allocation6], 1
    %294 = vsyncpa [#allocation4], 1

</llo_original>
